<compile_context>
chip_gen: v5e
topology: v5e:2x2
jax: 0.10.0
libtpu: 0.0.40
codegen_flags: <defaults>
</compile_context>

<pallas_src>
import jax
import jax.numpy as jnp
from jax.experimental import pallas as pl
from jax.experimental.pallas import tpu as pltpu

# ----------------------------- model config ---------------------------------
HIDDEN = 32            # hidden_size
SEQ    = 4             # fixed by the architecture: out = Linear(hidden_size * 4, 1)
BATCH  = 8
VOCAB  = 50
V_PAD  = 64            # vocab padded to a sublane multiple for the one-hot gather
LN_EPS = 1e-12         # BERT LayerNorm eps
ROWS   = SEQ * BATCH   # 32 gathered token rows (s-major / b-minor)

# packed parameter slab layout (rows of a (PAR_ROWS, HIDDEN) f32 array)
GAMMA_ROW = 0
BETA_ROW  = 1
BIAS_ROW  = 2          # bias value broadcast across all H lanes
POS_ROW   = 8          # rows 8 .. 8+SEQ-1   : position embeddings
W_ROW     = 16         # rows 16 .. 16+SEQ-1 : output head weight reshaped (S, H)
PAR_ROWS  = 24


# ------------------------------ Pallas kernel --------------------------------
def _ft_bert_kernel(ids_ref, lab_ref, tok_ref, par_ref, out_ref):
    # ids_ref : (ROWS, 1)        int32  VMEM  flattened token ids (s-major, b-minor)
    # lab_ref : (BATCH, 1)       f32    VMEM  labels for this step
    # tok_ref : (V_PAD, H)       f32    VMEM  token embedding table (zero-padded vocab)
    # par_ref : (PAR_ROWS, H)    f32    VMEM  [gamma, beta, bias, ..., pos(S), ..., w(S)]
    # out_ref : (2*BATCH, 1)     f32    out   rows 0..B-1 = logits, rows B.. = loss

    # ---- fused embedding gather via one-hot MXU matmul -------------------------
    ids = ids_ref[...]                                                   # (ROWS, 1)
    vocab_iota = jax.lax.broadcasted_iota(jnp.int32, (ROWS, V_PAD), 1)
    one_hot = (ids == vocab_iota).astype(jnp.float32)                    # (ROWS, V_PAD)
    x = jnp.dot(one_hot, tok_ref[...],
                preferred_element_type=jnp.float32)                      # (ROWS, H)

    # ---- position-embedding add + LayerNorm(H) on (S, B, H) --------------------
    x = x.reshape(SEQ, BATCH, HIDDEN)                 # clean 8-sublane split (B == 8)
    pos = par_ref[pl.ds(POS_ROW, SEQ), :]             # (S, H)
    x = x + pos[:, None, :]

    mu = jnp.mean(x, axis=-1, keepdims=True)
    xc = x - mu
    var = jnp.mean(xc * xc, axis=-1, keepdims=True)   # biased var, as torch LayerNorm
    xn = xc * jax.lax.rsqrt(var + LN_EPS)
    xn = xn * par_ref[pl.ds(GAMMA_ROW, 1), :] + par_ref[pl.ds(BETA_ROW, 1), :]

    # ---- output head: VPU multiply + reductions (no N=1 MXU matmul) ------------
    w = par_ref[pl.ds(W_ROW, SEQ), :]                                   # (S, H)
    part = jnp.sum(xn * w[:, None, :], axis=-1, keepdims=True)          # (S, B, 1)
    bias_row = par_ref[pl.ds(BIAS_ROW, 1), :]                           # (1, H), all equal
    logits = jnp.sum(part, axis=0) + bias_row[:, :1]                    # (B, 1)

    # ---- numerically-stable BCE with logits (PyTorch formula), mean reduction --
    y = lab_ref[...]
    per = (jnp.maximum(logits, 0.0) - logits * y
           + jnp.log1p(jnp.exp(-jnp.abs(logits))))                      # (B, 1)
    loss = jnp.mean(per, axis=0, keepdims=True)                         # (1, 1)

    # single combined writeback: [logits ; loss broadcast]
    out_ref[...] = jnp.concatenate(
        [logits, jnp.broadcast_to(loss, (BATCH, 1))], axis=0)           # (2B, 1)


# ------------------------------ wrapper / packing -----------------------------
def pack_params(params):
    """One-time parameter packing into the kernel's layouts (done outside jit)."""
    tok = jnp.zeros((V_PAD, HIDDEN), jnp.float32)
    tok = tok.at[:VOCAB].set(params["tok_emb"].astype(jnp.float32))

    slab = jnp.zeros((PAR_ROWS, HIDDEN), jnp.float32)
    slab = slab.at[GAMMA_ROW].set(params["ln_gamma"].reshape(HIDDEN))
    slab = slab.at[BETA_ROW].set(params["ln_beta"].reshape(HIDDEN))
    slab = slab.at[BIAS_ROW].set(jnp.full((HIDDEN,), params["out_b"].reshape(())[()]))
    slab = slab.at[POS_ROW:POS_ROW + SEQ].set(params["pos_emb"].astype(jnp.float32))
    slab = slab.at[W_ROW:W_ROW + SEQ].set(
        params["out_w"].reshape(SEQ, HIDDEN).astype(jnp.float32))

    return {"tok_table": tok, "par_slab": slab.astype(jnp.float32)}


def ft_bert_forward_steps(seqs_steps, labels_steps, packed):
    """Macro-batched forward.

    seqs_steps   : (NSTEPS, S, B) int32
    labels_steps : (NSTEPS, B, 1) float32
    returns (losses (NSTEPS,), preds (NSTEPS, B, 1))
    """
    nsteps = seqs_steps.shape[0]
    # s-major / b-minor flatten -> matches x.reshape(SEQ, BATCH, H) in the kernel
    ids = seqs_steps.reshape(nsteps, ROWS, 1).astype(jnp.int32)

    out = pl.pallas_call(
        _ft_bert_kernel,
        out_shape=jax.ShapeDtypeStruct((nsteps, 2 * BATCH, 1), jnp.float32),
        grid=(nsteps,),
        in_specs=[
            pl.BlockSpec((None, ROWS, 1), lambda i: (i, 0, 0)),       # ids (per step)
            pl.BlockSpec((None, BATCH, 1), lambda i: (i, 0, 0)),      # labels (per step)
            pl.BlockSpec((V_PAD, HIDDEN), lambda i: (0, 0)),          # token table (resident)
            pl.BlockSpec((PAR_ROWS, HIDDEN), lambda i: (0, 0)),       # param slab (resident)
        ],
        out_specs=pl.BlockSpec((None, 2 * BATCH, 1), lambda i: (i, 0, 0)),
        compiler_params=pltpu.CompilerParams(
            dimension_semantics=("parallel",)),                       # 2-TC shard on v7x
    )(ids, labels_steps.astype(jnp.float32),
      packed["tok_table"], packed["par_slab"])

    preds = out[:, :BATCH, :]          # (NSTEPS, B, 1)
    losses = out[:, BATCH, 0]          # (NSTEPS,)
    return losses, preds


def ft_bert_forward(seqs, labels, packed):
    """Single-step API matching the module: seqs (S,B) int32, labels (B,1) -> (loss, preds)."""
    losses, preds = ft_bert_forward_steps(seqs[None], labels[None], packed)
    return losses[0], preds[0]


# ----------------------------- reference (JAX) --------------------------------
def ft_bert_reference(seqs, labels, params):
    emb = jnp.take(params["tok_emb"], seqs, axis=0)                    # (S, B, H)
    emb = emb + params["pos_emb"][:, None, :]
    mean = jnp.mean(emb, axis=-1, keepdims=True)
    var = jnp.mean((emb - mean) ** 2, axis=-1, keepdims=True)
    emb = (emb - mean) * jax.lax.rsqrt(var + LN_EPS)
    emb = emb * params["ln_gamma"][0] + params["ln_beta"][0]
    emb = jnp.transpose(emb, (1, 0, 2)).reshape(emb.shape[1], -1)      # (B, S*H)
    logits = emb @ params["out_w"] + params["out_b"][0, 0]             # (B, 1)
    per = (jnp.maximum(logits, 0.0) - logits * labels
           + jnp.log1p(jnp.exp(-jnp.abs(logits))))
    return jnp.mean(per), logits


# --------------------------------- main ---------------------------------------
if __name__ == "__main__":
    key = jax.random.PRNGKey(0)
    k_tok, k_pos, k_g, k_b, k_w, k_bias, k_seq, k_lab = jax.random.split(key, 8)

    params = {
        "tok_emb": jax.random.normal(k_tok, (VOCAB, HIDDEN), jnp.float32) * 0.02,
        "pos_emb": jax.random.normal(k_pos, (SEQ, HIDDEN), jnp.float32) * 0.02,
        # randomized (not identity) so the gamma/beta path is actually exercised
        "ln_gamma": 1.0 + 0.1 * jax.random.normal(k_g, (1, HIDDEN), jnp.float32),
        "ln_beta": 0.1 * jax.random.normal(k_b, (1, HIDDEN), jnp.float32),
        "out_w": jax.random.normal(k_w, (SEQ * HIDDEN, 1), jnp.float32)
                 * (1.0 / jnp.sqrt(SEQ * HIDDEN)),
        "out_b": jax.random.normal(k_bias, (1, 1), jnp.float32) * 0.01,
    }

    NSTEPS = 4   # macro-batch of independent forward steps processed in one pallas_call
    seqs = jax.random.randint(k_seq, (NSTEPS, SEQ, BATCH), 0, VOCAB, dtype=jnp.int32)
    labels = jax.random.bernoulli(k_lab, 0.5, (NSTEPS, BATCH, 1)).astype(jnp.float32)

    packed = pack_params(params)          # one-time packing, outside the jitted step

    losses, preds = jax.jit(ft_bert_forward_steps)(seqs, labels, packed)
    jax.block_until_ready((losses, preds))

    for t in range(NSTEPS):
        ref_loss, ref_preds = ft_bert_reference(seqs[t], labels[t], params)
        assert jnp.allclose(losses[t], ref_loss, atol=1e-5, rtol=1e-5), (t, losses[t], ref_loss)
        assert jnp.allclose(preds[t], ref_preds, atol=1e-5, rtol=1e-5), t

    # single-step API (module-faithful) also works
    loss0, preds0 = jax.jit(ft_bert_forward)(seqs[0], labels[0], packed)
    jax.block_until_ready((loss0, preds0))
    assert jnp.allclose(loss0, losses[0], atol=1e-6)

    print("KERNEL_OK")
</pallas_src>

<mosaic_0001>
module attributes {stable_mosaic.version = 11 : i64} {
  func.func @_ft_bert_kernel(%arg0: i32, %arg1: memref<1x32x1xi32, #tpu.memory_space<vmem>>, %arg2: memref<1x8x1xf32, #tpu.memory_space<vmem>>, %arg3: memref<64x32xf32, #tpu.memory_space<vmem>>, %arg4: memref<24x32xf32, #tpu.memory_space<vmem>>, %arg5: memref<1x16x1xf32, #tpu.memory_space<vmem>>) attributes {dimension_semantics = [#tpu.dimension_semantics<parallel>], iteration_bounds = array<i64: 4>, scalar_prefetch = 0 : i64, scratch_operands = 0 : i64, tpu.core_type = #tpu.core_type<tc>, window_params = [{transform_indices = @transform_0, window_bounds = array<i64: 1, 32, 1>}, {transform_indices = @transform_1, window_bounds = array<i64: 1, 8, 1>}, {pipeline_mode = #tpu.pipeline_mode<synchronous>, transform_indices = @transform_2, window_bounds = array<i64: 64, 32>}, {pipeline_mode = #tpu.pipeline_mode<synchronous>, transform_indices = @transform_3, window_bounds = array<i64: 24, 32>}, {transform_indices = @transform_4, window_bounds = array<i64: 1, 16, 1>}]} {
    %c0 = arith.constant 0 : index
    %c0_0 = arith.constant 0 : index
    %c0_1 = arith.constant 0 : index
    %0 = vector.load %arg1[%c0, %c0_0, %c0_1] : memref<1x32x1xi32, #tpu.memory_space<vmem>>, vector<1x32x1xi32>
    %1 = vector.shape_cast %0 : vector<1x32x1xi32> to vector<32x1xi32>
    %2 = tpu.iota {dimensions = array<i32: 1>} : vector<32x64xi32>
    %3 = vector.broadcast %1 : vector<32x1xi32> to vector<32x64xi32>
    %4 = arith.cmpi eq, %3, %2 : vector<32x64xi32>
    %5 = arith.extui %4 : vector<32x64xi1> to vector<32x64xi32>
    %6 = arith.sitofp %5 : vector<32x64xi32> to vector<32x64xf32>
    %c0_2 = arith.constant 0 : index
    %c0_3 = arith.constant 0 : index
    %7 = vector.load %arg3[%c0_2, %c0_3] : memref<64x32xf32, #tpu.memory_space<vmem>>, vector<64x32xf32>
    %cst = arith.constant dense<0.000000e+00> : vector<32x32xf32>
    %8 = tpu.matmul %6, %7, %cst {dimension_numbers = #tpu.dot_dimension_numbers<[1], [0], [0], [1], [0, 0, 1, 1], [], []>} : vector<32x64xf32>, vector<64x32xf32>, vector<32x32xf32> -> vector<32x32xf32>
    %9 = vector.shape_cast %8 : vector<32x32xf32> to vector<4x8x32xf32>
    %c8 = arith.constant 8 : index
    %c0_4 = arith.constant 0 : index
    %10 = vector.load %arg4[%c8, %c0_4] : memref<24x32xf32, #tpu.memory_space<vmem>>, vector<4x32xf32>
    %11 = vector.shape_cast %10 : vector<4x32xf32> to vector<4x1x32xf32>
    %12 = vector.broadcast %11 : vector<4x1x32xf32> to vector<4x8x32xf32>
    %13 = arith.addf %9, %12 : vector<4x8x32xf32>
    %cst_5 = arith.constant dense<0.000000e+00> : vector<4x8xf32>
    %14 = vector.multi_reduction <add>, %13, %cst_5 [2] : vector<4x8x32xf32> to vector<4x8xf32>
    %15 = vector.shape_cast %14 : vector<4x8xf32> to vector<4x8x1xf32>
    %cst_6 = arith.constant 3.200000e+01 : f32
    %16 = vector.broadcast %cst_6 : f32 to vector<4x8x1xf32>
    %17 = arith.divf %15, %16 : vector<4x8x1xf32>
    %18 = vector.broadcast %17 : vector<4x8x1xf32> to vector<4x8x32xf32>
    %19 = arith.subf %13, %18 : vector<4x8x32xf32>
    %20 = arith.mulf %19, %19 : vector<4x8x32xf32>
    %cst_7 = arith.constant dense<0.000000e+00> : vector<4x8xf32>
    %21 = vector.multi_reduction <add>, %20, %cst_7 [2] : vector<4x8x32xf32> to vector<4x8xf32>
    %22 = vector.shape_cast %21 : vector<4x8xf32> to vector<4x8x1xf32>
    %cst_8 = arith.constant 3.200000e+01 : f32
    %23 = vector.broadcast %cst_8 : f32 to vector<4x8x1xf32>
    %24 = arith.divf %22, %23 : vector<4x8x1xf32>
    %cst_9 = arith.constant 9.99999996E-13 : f32
    %25 = vector.broadcast %cst_9 : f32 to vector<4x8x1xf32>
    %26 = arith.addf %24, %25 : vector<4x8x1xf32>
    %27 = math.rsqrt %26 : vector<4x8x1xf32>
    %28 = vector.broadcast %27 : vector<4x8x1xf32> to vector<4x8x32xf32>
    %29 = arith.mulf %19, %28 : vector<4x8x32xf32>
    %c0_10 = arith.constant 0 : index
    %c0_11 = arith.constant 0 : index
    %30 = vector.load %arg4[%c0_10, %c0_11] : memref<24x32xf32, #tpu.memory_space<vmem>>, vector<1x32xf32>
    %31 = vector.shape_cast %30 : vector<1x32xf32> to vector<1x1x32xf32>
    %32 = vector.broadcast %31 : vector<1x1x32xf32> to vector<4x8x32xf32>
    %33 = arith.mulf %29, %32 : vector<4x8x32xf32>
    %c1 = arith.constant 1 : index
    %c0_12 = arith.constant 0 : index
    %34 = vector.load %arg4[%c1, %c0_12] : memref<24x32xf32, #tpu.memory_space<vmem>>, vector<1x32xf32>
    %35 = vector.shape_cast %34 : vector<1x32xf32> to vector<1x1x32xf32>
    %36 = vector.broadcast %35 : vector<1x1x32xf32> to vector<4x8x32xf32>
    %37 = arith.addf %33, %36 : vector<4x8x32xf32>
    %c16 = arith.constant 16 : index
    %c0_13 = arith.constant 0 : index
    %38 = vector.load %arg4[%c16, %c0_13] : memref<24x32xf32, #tpu.memory_space<vmem>>, vector<4x32xf32>
    %39 = vector.shape_cast %38 : vector<4x32xf32> to vector<4x1x32xf32>
    %40 = vector.broadcast %39 : vector<4x1x32xf32> to vector<4x8x32xf32>
    %41 = arith.mulf %37, %40 : vector<4x8x32xf32>
    %cst_14 = arith.constant dense<0.000000e+00> : vector<4x8xf32>
    %42 = vector.multi_reduction <add>, %41, %cst_14 [2] : vector<4x8x32xf32> to vector<4x8xf32>
    %43 = vector.shape_cast %42 : vector<4x8xf32> to vector<4x8x1xf32>
    %c2 = arith.constant 2 : index
    %c0_15 = arith.constant 0 : index
    %44 = vector.load %arg4[%c2, %c0_15] : memref<24x32xf32, #tpu.memory_space<vmem>>, vector<1x32xf32>
    %cst_16 = arith.constant dense<0.000000e+00> : vector<8x1xf32>
    %45 = vector.multi_reduction <add>, %43, %cst_16 [0] : vector<4x8x1xf32> to vector<8x1xf32>
    %46 = vector.extract_strided_slice %44 {offsets = [0, 0], sizes = [1, 1], strides = [1, 1]} : vector<1x32xf32> to vector<1x1xf32>
    %47 = vector.broadcast %46 : vector<1x1xf32> to vector<8x1xf32>
    %48 = arith.addf %45, %47 : vector<8x1xf32>
    %c0_17 = arith.constant 0 : index
    %c0_18 = arith.constant 0 : index
    %c0_19 = arith.constant 0 : index
    %49 = vector.load %arg2[%c0_17, %c0_18, %c0_19] : memref<1x8x1xf32, #tpu.memory_space<vmem>>, vector<1x8x1xf32>
    %50 = vector.shape_cast %49 : vector<1x8x1xf32> to vector<8x1xf32>
    %cst_20 = arith.constant 0.000000e+00 : f32
    %51 = vector.broadcast %cst_20 : f32 to vector<8x1xf32>
    %52 = arith.maximumf %48, %51 : vector<8x1xf32>
    %53 = arith.mulf %48, %50 : vector<8x1xf32>
    %54 = arith.subf %52, %53 : vector<8x1xf32>
    %55 = math.absf %48 : vector<8x1xf32>
    %cst_21 = arith.constant 0.000000e+00 : f32
    %56 = vector.broadcast %cst_21 : f32 to vector<8x1xf32>
    %57 = arith.subf %56, %55 : vector<8x1xf32>
    %58 = math.exp %57 : vector<8x1xf32>
    %59 = math.log1p %58 : vector<8x1xf32>
    %60 = arith.addf %54, %59 : vector<8x1xf32>
    %cst_22 = arith.constant dense<0.000000e+00> : vector<1xf32>
    %61 = vector.multi_reduction <add>, %60, %cst_22 [0] : vector<8x1xf32> to vector<1xf32>
    %62 = vector.shape_cast %61 : vector<1xf32> to vector<1x1xf32>
    %cst_23 = arith.constant 8.000000e+00 : f32
    %63 = vector.broadcast %cst_23 : f32 to vector<1x1xf32>
    %64 = arith.divf %62, %63 : vector<1x1xf32>
    %65 = vector.shape_cast %64 : vector<1x1xf32> to vector<1x1xf32>
    %66 = vector.broadcast %65 : vector<1x1xf32> to vector<8x1xf32>
    %67 = tpu.concatenate %48, %66 in 0 : vector<8x1xf32>, vector<8x1xf32> -> vector<16x1xf32>
    %c0_24 = arith.constant 0 : index
    %c0_25 = arith.constant 0 : index
    %c0_26 = arith.constant 0 : index
    %68 = vector.load %arg5[%c0_24, %c0_25, %c0_26] : memref<1x16x1xf32, #tpu.memory_space<vmem>>, vector<1x16x1xf32>
    %69 = vector.shape_cast %68 : vector<1x16x1xf32> to vector<16x1xf32>
    %70 = vector.shape_cast %67 : vector<16x1xf32> to vector<1x16x1xf32>
    tpu.vector_store %arg5[%c0_24, %c0_25, %c0_26], %70 {strides = array<i32>} : memref<1x16x1xf32, #tpu.memory_space<vmem>>, vector<1x16x1xf32>,
    return
  }
  func.func @transform_0(%arg0: i32) -> (i32, i32, i32) {
    %c0_i32 = arith.constant 0 : i32
    %c0_i32_0 = arith.constant 0 : i32
    %c0_i32_1 = arith.constant 0 : i32
    return %arg0, %c0_i32, %c0_i32_0 : i32, i32, i32
  }
  func.func @transform_1(%arg0: i32) -> (i32, i32, i32) {
    %c0_i32 = arith.constant 0 : i32
    %c0_i32_0 = arith.constant 0 : i32
    %c0_i32_1 = arith.constant 0 : i32
    return %arg0, %c0_i32, %c0_i32_0 : i32, i32, i32
  }
  func.func @transform_2(%arg0: i32) -> (i32, i32) {
    %c0_i32 = arith.constant 0 : i32
    %c0_i32_0 = arith.constant 0 : i32
    %c0_i32_1 = arith.constant 0 : i32
    return %c0_i32, %c0_i32_0 : i32, i32
  }
  func.func @transform_3(%arg0: i32) -> (i32, i32) {
    %c0_i32 = arith.constant 0 : i32
    %c0_i32_0 = arith.constant 0 : i32
    %c0_i32_1 = arith.constant 0 : i32
    return %c0_i32, %c0_i32_0 : i32, i32
  }
  func.func @transform_4(%arg0: i32) -> (i32, i32, i32) {
    %c0_i32 = arith.constant 0 : i32
    %c0_i32_0 = arith.constant 0 : i32
    %c0_i32_1 = arith.constant 0 : i32
    return %arg0, %c0_i32, %c0_i32_0 : i32, i32, i32
  }
}

</mosaic_0001>

<llo_original>
// kernel: ft_bert_forward_steps.1
$region0: #{ft_bert_forward_steps.1}
  #allocation0 [shape = 'u32[]', space=smem, size = 0x4, offset = 0x4, fixed_abs, tag = 'smem constant byte address 0x4 - core index']
  #allocation1 [shape = 'u32[72,128]{1,0:T(1,128)}', space=vmem, size = 0x9000, scoped, tag = 'internal scratch']
  %s0 = inlined_call_operand.vmem [shape: s32[4,32,1], index: 0, kind: input, shape index: {}]
  %s1 = inlined_call_operand.vmem [shape: f32[4,8,1], index: 1, kind: input, shape index: {}]
  %s2 = inlined_call_operand.vmem [shape: f32[64,32], index: 2, kind: input, shape index: {}]
  %s3 = inlined_call_operand.vmem [shape: f32[24,32], index: 3, kind: input, shape index: {}]
  %s4 = inlined_call_operand.vmem [shape: f32[4,16,1], index: 4, kind: output, shape index: {}]
  %s5 = sld [smem:[#allocation0]]
  $region49: #{ft_bert_forward_steps.1} parent=0
    _
  %s7 = ssub.s32 1, %s5
  %s8 = scalar_select 0, %s7, %s5
  loop: start=0, step=1, limit=6
  $region2: #{ft_bert_forward_steps.1} parent=0 // loop_pre_header
    _
  $region3: #{ft_bert_forward_steps.1} parent=0 // loop_header
    %s10 = sphi 0, %s14
    %p11 = scmp.ge.s32.totalorder %s10, 6
    %s20 = sphi 0, %s22
    %s23 = sphi 0, %s20
    %s24 = sphi 0, %s23
    %s40 = sphi 0, %s24
    %s46 = sphi 0, %s48
    %s49 = sphi 0, %s46
    %s50 = sphi 0, %s49
    %s66 = sphi 0, %s50
    %s70 = sphi 0, %s70
    %s72 = sphi 0, %s70
    %s73 = sphi 0, %s72
    %s87 = sphi 0, %s73
    %s91 = sphi 0, %s91
    %s93 = sphi 0, %s91
    %s94 = sphi 0, %s93
    %s108 = sphi 0, %s94
    %s114 = sphi 0, %s116
    %s117 = sphi 0, %s114
    %s118 = sphi 0, %s117
    %s134 = sphi 0, %s118
  $region4: #{ft_bert_forward_steps.1} parent=0 // loop_header_branch
    %13 = sbr.rel (%p11) target = $region8
  $region5: #{ft_bert_forward_steps.1} parent=0 // loop_body
    %s15 = ssub.s32 %s10, 1
    %s16 = ssub.s32 %s10, 2
    %s17 = sadd.s32 %s10, 1
    %s18 = ssub.s32 %s10, %s17
    %p19 = scmp.eq.s32.totalorder %s18, 0
    %s21 = sadd.s32 %s20, 1
    %s22 = scalar_select %p19, %s20, %s21
    %p25 = pneg %p19
    %p26 = scmp.eq.s32.totalorder %s10, 3
    %p27 = por %p25, %p26
    %p28 = scmp.ne.s32.totalorder %s20, %s23
    %p29 = scmp.eq.s32.totalorder %s10, 0
    %p30 = por %p28, %p29
    %p31 = scmp.ne.s32.totalorder %s20, %s23
    %p32 = scmp.eq.s32.totalorder %s15, 3
    %p33 = por %p31, %p32
    %p34 = scmp.ne.s32.totalorder %s23, %s24
    %p35 = scmp.eq.s32.totalorder %s15, 0
    %p36 = por %p34, %p35
    %p37 = scmp.ne.s32.totalorder %s23, %s24
    %p38 = scmp.eq.s32.totalorder %s16, 3
    %p39 = por %p37, %p38
    %p41 = scmp.ne.s32.totalorder %s24, %s40
    %p42 = scmp.eq.s32.totalorder %s16, 0
    %p43 = por %p41, %p42
    %s44 = ssub.s32 %s10, %s17
    %p45 = scmp.eq.s32.totalorder %s44, 0
    %s47 = sadd.s32 %s46, 1
    %s48 = scalar_select %p45, %s46, %s47
    %p51 = pneg %p45
    %p52 = scmp.eq.s32.totalorder %s10, 3
    %p53 = por %p51, %p52
    %p54 = scmp.ne.s32.totalorder %s46, %s49
    %p55 = scmp.eq.s32.totalorder %s10, 0
    %p56 = por %p54, %p55
    %p57 = scmp.ne.s32.totalorder %s46, %s49
    %p58 = scmp.eq.s32.totalorder %s15, 3
    %p59 = por %p57, %p58
    %p60 = scmp.ne.s32.totalorder %s49, %s50
    %p61 = scmp.eq.s32.totalorder %s15, 0
    %p62 = por %p60, %p61
    %p63 = scmp.ne.s32.totalorder %s49, %s50
    %p64 = scmp.eq.s32.totalorder %s16, 3
    %p65 = por %p63, %p64
    %p67 = scmp.ne.s32.totalorder %s50, %s66
    %p68 = scmp.eq.s32.totalorder %s16, 0
    %p69 = por %p67, %p68
    %s71 = sadd.s32 %s70, 1
    %p74 = scmp.eq.s32.totalorder %s10, 3
    %p75 = scmp.ne.s32.totalorder %s70, %s72
    %p76 = scmp.eq.s32.totalorder %s10, 0
    %p77 = por %p75, %p76
    %p78 = scmp.ne.s32.totalorder %s70, %s72
    %p79 = scmp.eq.s32.totalorder %s15, 3
    %p80 = por %p78, %p79
    %p81 = scmp.ne.s32.totalorder %s72, %s73
    %p82 = scmp.eq.s32.totalorder %s15, 0
    %p83 = por %p81, %p82
    %p84 = scmp.ne.s32.totalorder %s72, %s73
    %p85 = scmp.eq.s32.totalorder %s16, 3
    %p86 = por %p84, %p85
    %p88 = scmp.ne.s32.totalorder %s73, %s87
    %p89 = scmp.eq.s32.totalorder %s16, 0
    %p90 = por %p88, %p89
    %s92 = sadd.s32 %s91, 1
    %p95 = scmp.eq.s32.totalorder %s10, 3
    %p96 = scmp.ne.s32.totalorder %s91, %s93
    %p97 = scmp.eq.s32.totalorder %s10, 0
    %p98 = por %p96, %p97
    %p99 = scmp.ne.s32.totalorder %s91, %s93
    %p100 = scmp.eq.s32.totalorder %s15, 3
    %p101 = por %p99, %p100
    %p102 = scmp.ne.s32.totalorder %s93, %s94
    %p103 = scmp.eq.s32.totalorder %s15, 0
    %p104 = por %p102, %p103
    %p105 = scmp.ne.s32.totalorder %s93, %s94
    %p106 = scmp.eq.s32.totalorder %s16, 3
    %p107 = por %p105, %p106
    %p109 = scmp.ne.s32.totalorder %s94, %s108
    %p110 = scmp.eq.s32.totalorder %s16, 0
    %p111 = por %p109, %p110
    %s112 = ssub.s32 %s10, %s17
    %p113 = scmp.eq.s32.totalorder %s112, 0
    %s115 = sadd.s32 %s114, 1
    %s116 = scalar_select %p113, %s114, %s115
    %p119 = pneg %p113
    %p120 = scmp.eq.s32.totalorder %s10, 3
    %p121 = por %p119, %p120
    %p122 = scmp.ne.s32.totalorder %s114, %s117
    %p123 = scmp.eq.s32.totalorder %s10, 0
    %p124 = por %p122, %p123
    %p125 = scmp.ne.s32.totalorder %s114, %s117
    %p126 = scmp.eq.s32.totalorder %s15, 3
    %p127 = por %p125, %p126
    %p128 = scmp.ne.s32.totalorder %s117, %s118
    %p129 = scmp.eq.s32.totalorder %s15, 0
    %p130 = por %p128, %p129
    %p131 = scmp.ne.s32.totalorder %s117, %s118
    %p132 = scmp.eq.s32.totalorder %s16, 3
    %p133 = por %p131, %p132
    %p135 = scmp.ne.s32.totalorder %s118, %s134
    %p136 = scmp.eq.s32.totalorder %s16, 0
    %p137 = por %p135, %p136
    %p138 = scmp.le.s32.totalorder 1, %s10
    %p139 = scmp.lt.s32.totalorder %s10, 5
    %p140 = pnand %p138, %p139
    %p141 = pneg %p140
    // Predicated region
    $region9: #{ft_bert_forward_steps.1} parent=5 // pred_check
      _
    $region10: #{ft_bert_forward_steps.1} parent=5 // pred_check_branch
      %143 = sbr.rel (%p140) target = $region12
    $region11: #{ft_bert_forward_steps.1} parent=5 // pred_region
      %s144 = ssub.s32 %s10, 1
      // Predicated region
      $region13: #{ft_bert_forward_steps.1} parent=11 // pred_check
        %p145 = pneg %p83
      $region14: #{ft_bert_forward_steps.1} parent=11 // pred_check_branch
        %147 = sbr.rel (%p145) target = $region16
      $region15: #{ft_bert_forward_steps.1} parent=11 // pred_region
        _
      $region16: #{ft_bert_forward_steps.1} parent=11 // pred_fallthru
        _
      // Predicated region
      $region17: #{ft_bert_forward_steps.1} parent=11 // pred_check
        %p148 = pneg %p104
      $region18: #{ft_bert_forward_steps.1} parent=11 // pred_check_branch
        %150 = sbr.rel (%p148) target = $region20
      $region19: #{ft_bert_forward_steps.1} parent=11 // pred_region
        _
      $region20: #{ft_bert_forward_steps.1} parent=11 // pred_fallthru
        _
    $region12: #{ft_bert_forward_steps.1} parent=5 // pred_fallthru
      _
    %p151 = scmp.lt.s32.totalorder %s10, 4
    // Predicated region
    $region21: #{ft_bert_forward_steps.1} parent=5 // pred_check
      %p152 = pneg %p151
    $region22: #{ft_bert_forward_steps.1} parent=5 // pred_check_branch
      %154 = sbr.rel (%p152) target = $region24
    $region23: #{ft_bert_forward_steps.1} parent=5 // pred_region
      // Predicated region
      $region25: #{ft_bert_forward_steps.1} parent=23 // pred_check
        %p155 = pneg %p30
      $region26: #{ft_bert_forward_steps.1} parent=23 // pred_check_branch
        %157 = sbr.rel (%p155) target = $region28
      $region27: #{ft_bert_forward_steps.1} parent=23 // pred_region
        %p158 = scmp.lt.s32.totalorder %s10, 3
        %s159 = scalar_select %p158, %s10, 3
        %s160 = smul.addr %s159, 4
        %s161 = smul.addr %s160, 8
        %s162 = scalar_lea.vmem %s0, %s161
      $region28: #{ft_bert_forward_steps.1} parent=23 // pred_fallthru
        _
      // Predicated region
      $region29: #{ft_bert_forward_steps.1} parent=23 // pred_check
        %p163 = pneg %p56
      $region30: #{ft_bert_forward_steps.1} parent=23 // pred_check_branch
        %165 = sbr.rel (%p163) target = $region32
      $region31: #{ft_bert_forward_steps.1} parent=23 // pred_region
        %p166 = scmp.lt.s32.totalorder %s10, 3
        %s167 = scalar_select %p166, %s10, 3
        %s168 = smul.addr %s167, 8
        %s169 = scalar_lea.vmem %s1, %s168
      $region32: #{ft_bert_forward_steps.1} parent=23 // pred_fallthru
        _
    $region24: #{ft_bert_forward_steps.1} parent=5 // pred_fallthru
      _
    %p170 = scmp.le.s32.totalorder 1, %s10
    %p171 = scmp.lt.s32.totalorder %s10, 5
    %p172 = pnand %p170, %p171
    %p173 = pneg %p172
    // Predicated region
    $region33: #{ft_bert_forward_steps.1} parent=5 // pred_check
      _
    $region34: #{ft_bert_forward_steps.1} parent=5 // pred_check_branch
      %175 = sbr.rel (%p172) target = $region36
    $region35: #{ft_bert_forward_steps.1} parent=5 // pred_region
      %s176 = ssub.s32 %s10, 1
      %p177 = scmp.lt.s32.totalorder %s15, 3
      %s178 = scalar_select %p177, %s15, 3
      %s179 = smul.addr %s178, 4
      %s180 = smul.addr %s179, 8
      %s181 = scalar_lea.vmem %s0, %s180
      %p182 = pneg %p36
      %p183 = pneg %p33
      %p184 = scmp.lt.s32.totalorder %s15, 3
      %s185 = scalar_select %p184, %s15, 3
      %s186 = smul.addr %s185, 8
      %s187 = scalar_lea.vmem %s1, %s186
      %p188 = pneg %p62
      %p189 = pneg %p59
      %p190 = pneg %p83
      %p191 = pneg %p80
      %p192 = pneg %p104
      %p193 = pneg %p101
      %p194 = pneg %p130
      %p195 = pneg %p127
      %p196 = scmp.lt.s32.totalorder %s15, 3
      %s197 = scalar_select %p196, %s15, 3
      %s198 = smul.addr %s197, 2
      %s199 = smul.addr %s198, 8
      %s200 = scalar_lea.vmem %s4, %s199
      %p201 = scmp.lt.s32.totalorder %s15, 3
      %s202 = scalar_select %p201, %s15, 3
      %s203 = smul.addr %s202, 4
      %s204 = smul.addr %s203, 8
      %s205 = scalar_lea.vmem %s0, %s204
      %p206 = scmp.lt.s32.totalorder %s15, 3
      %s207 = scalar_select %p206, %s15, 3
      %s208 = smul.addr %s207, 8
      %s209 = scalar_lea.vmem %s1, %s208
      %p210 = scmp.lt.s32.totalorder %s15, 3
      %s211 = scalar_select %p210, %s15, 3
      %s212 = smul.addr %s211, 2
      %s213 = smul.addr %s212, 8
      %s214 = scalar_lea.vmem %s4, %s213
      %v215 = vld [vmem:[%s205] sm:$0xff]
      %v216 = vld [vmem:[%s205 + $0x8] sm:$0xff]
      %v217 = vld [vmem:[%s205 + $0x10] sm:$0xff]
      %v218 = vld [vmem:[%s205 + $0x18] sm:$0xff]
      %v219 = vlaneseq
      %v220 = vand.u32 %v219, 127
      %221 = vset.pattern.permute.xlu0 0
      %222 = vperm.xlu0 %221, %v215
      %v223 = vpop.permute.xlu0 %222
      %224 = vset.pattern.permute.xlu0 0
      %225 = vperm.xlu0 %224, %v216
      %v226 = vpop.permute.xlu0 %225
      %227 = vset.pattern.permute.xlu0 0
      %228 = vperm.xlu0 %227, %v217
      %v229 = vpop.permute.xlu0 %228
      %230 = vset.pattern.permute.xlu0 0
      %231 = vperm.xlu0 %230, %v218
      %v232 = vpop.permute.xlu0 %231
      %vm233 = vcmp.eq.s32.totalorder %v223, %v220
      %vm234 = vcmp.eq.s32.totalorder %v226, %v220
      %vm235 = vcmp.eq.s32.totalorder %v229, %v220
      %vm236 = vcmp.eq.s32.totalorder %v232, %v220
      %v237 = vsel %vm233, 1, 0
      %v238 = vsel %vm234, 1, 0
      %v239 = vsel %vm235, 1, 0
      %v240 = vsel %vm236, 1, 0
      %v241 = vcvt.s32.f32 %v237
      %v242 = vcvt.s32.f32 %v238
      %v243 = vcvt.s32.f32 %v239
      %v244 = vcvt.s32.f32 %v240
      %v245 = vld [vmem:[%s2] sm:$0xff]
      %v246 = vld [vmem:[%s2 + $0x8] sm:$0xff]
      %v247 = vld [vmem:[%s2 + $0x10] sm:$0xff]
      %v248 = vld [vmem:[%s2 + $0x18] sm:$0xff]
      %v249 = vld [vmem:[%s2 + $0x20] sm:$0xff]
      %v250 = vld [vmem:[%s2 + $0x28] sm:$0xff]
      %v251 = vld [vmem:[%s2 + $0x30] sm:$0xff]
      %v252 = vld [vmem:[%s2 + $0x38] sm:$0xff]
      %vm253 = vcmask 523264
      %v255 = vsel %vm253, %v241, 0
      %v258 = vsel %vm253, %v242, 0
      %v261 = vsel %vm253, %v243, 0
      %v264 = vsel %vm253, %v244, 0
      %266 = vmatpush.msra.mxu0 0.0
      %267 = vmatpush.msra.mxu0 0.0
      %268 = vmatpush.msra.mxu0 0.0
      %269 = vmatpush.msra.mxu0 0.0
      %270 = vmatpush.msra.mxu0 0.0
      %271 = vmatpush.msra.mxu0 0.0
      %272 = vmatpush.msra.mxu0 0.0
      %273 = vmatpush.msra.mxu0 0.0
      %274 = vmatpush.msra.mxu0 %v252
      %275 = vmatpush.msra.mxu0 %v251
      %276 = vmatpush.msra.mxu0 %v250
      %277 = vmatpush.msra.mxu0 %v249
      %278 = vmatpush.msra.mxu0 %v248
      %279 = vmatpush.msra.mxu0 %v247
      %280 = vmatpush.msra.mxu0 %v246
      %281 = vmatpush.msra.mxu0 %v245
      %282 = vmatmul.f32.gmra.mxu0 %v255
      %v283 = vpop.f32.mrf.mxu0
      %v284 = vadd.f32 0.0, %v283
      %285 = vmatmul.f32.gmra.mxu0 %v258
      %v286 = vpop.f32.mrf.mxu0
      %v287 = vadd.f32 0.0, %v286
      %288 = vmatmul.f32.gmra.mxu0 %v261
      %v289 = vpop.f32.mrf.mxu0
      %v290 = vadd.f32 0.0, %v289
      %291 = vmatmul.f32.gmra.mxu0 %v264
      %v292 = vpop.f32.mrf.mxu0
      %v293 = vadd.f32 0.0, %v292
      %294 = vdwg.mxu0
      %v295 = vld [vmem:[%s3 + $0x8] sm:$0xf]
      %v297 = vrot.slane %v295, 1
      %v298 = vrot.slane %v295, 2
      %v299 = vrot.slane %v295, 3
      %v300 = vperm.slane %v295, 0
      %v301 = vperm.slane %v297, 0
      %v302 = vperm.slane %v298, 0
      %v303 = vperm.slane %v299, 0
      %v308 = vadd.f32 %v284, %v300
      %v309 = vadd.f32 %v287, %v301
      %v310 = vadd.f32 %v290, %v302
      %v311 = vadd.f32 %v293, %v303
      %vm312 = vcmask 261120
      %v313 = vsel %vm312, %v308, 0.0
      %314 = vadd.xlane.f32.xlu0 %v313
      %v315 = vpop.xlane.xlu0 %314
      %v316 = vsel %vm312, %v309, 0.0
      %317 = vadd.xlane.f32.xlu0 %v316
      %v318 = vpop.xlane.xlu0 %317
      %v319 = vsel %vm312, %v310, 0.0
      %320 = vadd.xlane.f32.xlu0 %v319
      %v321 = vpop.xlane.xlu0 %320
      %v322 = vsel %vm312, %v311, 0.0
      %323 = vadd.xlane.f32.xlu0 %v322
      %v324 = vpop.xlane.xlu0 %323
      %v325 = vrcp.pop 32.0
      %v326 = vmul.f32 32.0, %v325
      %v327 = vsub.f32 1.0, %v326
      %v328 = vmul.f32 %v325, %v327
      %v329 = vadd.f32 %v325, %v328
      %vm330 = vweird.f32 %v325
      %v331 = vsel %vm330, %v325, %v329
      %v332 = vmul.f32 %v315, %v331
      %v333 = vmul.f32 %v318, %v331
      %v334 = vmul.f32 %v321, %v331
      %v335 = vmul.f32 %v324, %v331
      %v336 = vsub.f32 %v308, %v332
      %v337 = vsub.f32 %v309, %v333
      %v338 = vsub.f32 %v310, %v334
      %v339 = vsub.f32 %v311, %v335
      %v340 = vmul.f32 %v336, %v336
      %v341 = vmul.f32 %v337, %v337
      %v342 = vmul.f32 %v338, %v338
      %v343 = vmul.f32 %v339, %v339
      %v344 = vsel %vm312, %v340, 0.0
      %345 = vadd.xlane.f32.xlu0 %v344
      %v346 = vpop.xlane.xlu0 %345
      %v347 = vsel %vm312, %v341, 0.0
      %348 = vadd.xlane.f32.xlu0 %v347
      %v349 = vpop.xlane.xlu0 %348
      %v350 = vsel %vm312, %v342, 0.0
      %351 = vadd.xlane.f32.xlu0 %v350
      %v352 = vpop.xlane.xlu0 %351
      %v353 = vsel %vm312, %v343, 0.0
      %354 = vadd.xlane.f32.xlu0 %v353
      %v355 = vpop.xlane.xlu0 %354
      %v356 = vmul.f32 %v346, %v331
      %v357 = vmul.f32 %v349, %v331
      %v358 = vmul.f32 %v352, %v331
      %v359 = vmul.f32 %v355, %v331
      %v360 = vadd.f32 %v356, 1e-12
      %v361 = vadd.f32 %v357, 1e-12
      %v362 = vadd.f32 %v358, 1e-12
      %v363 = vadd.f32 %v359, 1e-12
      %v364 = vrsqrt.pop %v360
      %v365 = vmul.f32 %v364, %v360
      %v366 = vmul.f32 %v365, %v364
      %v367 = vmul.f32 0.5, %v366
      %v368 = vsub.f32 1.5, %v367
      %v369 = vmul.f32 %v364, %v368
      %vm370 = vweird.f32 %v360
      %vm371 = vweird.f32 %v364
      %vm372 = vmor %vm370, %vm371
      %v373 = vsel %vm372, %v364, %v369
      %v374 = vrsqrt.pop %v361
      %v375 = vmul.f32 %v374, %v361
      %v376 = vmul.f32 %v375, %v374
      %v377 = vmul.f32 0.5, %v376
      %v378 = vsub.f32 1.5, %v377
      %v379 = vmul.f32 %v374, %v378
      %vm380 = vweird.f32 %v361
      %vm381 = vweird.f32 %v374
      %vm382 = vmor %vm380, %vm381
      %v383 = vsel %vm382, %v374, %v379
      %v384 = vrsqrt.pop %v362
      %v385 = vmul.f32 %v384, %v362
      %v386 = vmul.f32 %v385, %v384
      %v387 = vmul.f32 0.5, %v386
      %v388 = vsub.f32 1.5, %v387
      %v389 = vmul.f32 %v384, %v388
      %vm390 = vweird.f32 %v362
      %vm391 = vweird.f32 %v384
      %vm392 = vmor %vm390, %vm391
      %v393 = vsel %vm392, %v384, %v389
      %v394 = vrsqrt.pop %v363
      %v395 = vmul.f32 %v394, %v363
      %v396 = vmul.f32 %v395, %v394
      %v397 = vmul.f32 0.5, %v396
      %v398 = vsub.f32 1.5, %v397
      %v399 = vmul.f32 %v394, %v398
      %vm400 = vweird.f32 %v363
      %vm401 = vweird.f32 %v394
      %vm402 = vmor %vm400, %vm401
      %v403 = vsel %vm402, %v394, %v399
      %v404 = vmul.f32 %v336, %v373
      %v405 = vmul.f32 %v337, %v383
      %v406 = vmul.f32 %v338, %v393
      %v407 = vmul.f32 %v339, %v403
      %v408 = vld [vmem:[%s3] sm:$0x1]
      %v409 = vperm.slane %v408, 0
      %v410 = vmul.f32 %v404, %v409
      %v411 = vmul.f32 %v405, %v409
      %v412 = vmul.f32 %v406, %v409
      %v413 = vmul.f32 %v407, %v409
      %v414 = vld [vmem:[%s3 + $0x1] sm:$0x1]
      %v415 = vperm.slane %v414, 0
      %v416 = vadd.f32 %v410, %v415
      %v417 = vadd.f32 %v411, %v415
      %v418 = vadd.f32 %v412, %v415
      %v419 = vadd.f32 %v413, %v415
      %v420 = vld [vmem:[%s3 + $0x10] sm:$0xf]
      %v422 = vrot.slane %v420, 1
      %v423 = vrot.slane %v420, 2
      %v424 = vrot.slane %v420, 3
      %v425 = vperm.slane %v420, 0
      %v426 = vperm.slane %v422, 0
      %v427 = vperm.slane %v423, 0
      %v428 = vperm.slane %v424, 0
      %v433 = vmul.f32 %v416, %v425
      %v434 = vmul.f32 %v417, %v426
      %v435 = vmul.f32 %v418, %v427
      %v436 = vmul.f32 %v419, %v428
      %v437 = vsel %vm312, %v433, 0.0
      %438 = vadd.xlane.f32.xlu0 %v437
      %v439 = vpop.xlane.xlu0 %438
      %v440 = vsel %vm312, %v434, 0.0
      %441 = vadd.xlane.f32.xlu0 %v440
      %v442 = vpop.xlane.xlu0 %441
      %v443 = vsel %vm312, %v435, 0.0
      %444 = vadd.xlane.f32.xlu0 %v443
      %v445 = vpop.xlane.xlu0 %444
      %v446 = vsel %vm312, %v436, 0.0
      %447 = vadd.xlane.f32.xlu0 %v446
      %v448 = vpop.xlane.xlu0 %447
      %v449 = vld [vmem:[%s3 + $0x2] sm:$0x1]
      %v450 = vadd.f32 %v439, %v442
      %v451 = vadd.f32 %v450, %v445
      %v452 = vadd.f32 %v451, %v448
      %v453 = vperm.slane %v449, 0
      %v454 = vadd.f32 %v452, %v453
      %v455 = vld [vmem:[%s209] sm:$0xff]
      %v456 = vmax.f32 %v454, 0.0
      %v457 = vmul.f32 %v454, %v455
      %v458 = vsub.f32 %v456, %v457
      %v459 = vand.u32 2147483647, %v454
      %v460 = vsub.f32 0.0, %v459
      %v461 = vmul.f32 %v460, 1.442695
      %v462 = vpow.pop %v461
      %v463 = vadd.f32 %v462, 1.0
      %v464 = vlog2.pop %v463
      %v465 = vmul.f32 %v464, 0.6931472
      %v466 = vmul.f32 -0.5, %v462
      %v467 = vadd.f32 %v466, 1.0
      %v468 = vmul.f32 %v467, %v462
      %v469 = vand.u32 2147483647, %v462
      %vm470 = vcmp.lt.f32.partialorder %v469, 0.0004427343
      %v471 = vsel %vm470, %v468, %v465
      %v472 = vadd.f32 %v458, %v471
      %vm473 = vcmask 7168
      %v474 = vsel %vm473, %v472, 0.0
      %v475 = vrot.slane %v474, 4
      %v476 = vadd.f32 %v474, %v475
      %v477 = vrot.slane %v476, 2
      %v478 = vadd.f32 %v476, %v477
      %v479 = vrot.slane %v478, 1
      %v480 = vadd.f32 %v478, %v479
      %v481 = vrcp.pop 8.0
      %v482 = vmul.f32 8.0, %v481
      %v483 = vsub.f32 1.0, %v482
      %v484 = vmul.f32 %v481, %v483
      %v485 = vadd.f32 %v481, %v484
      %vm486 = vweird.f32 %v481
      %v487 = vsel %vm486, %v481, %v485
      %v488 = vmul.f32 %v480, %v487
      %489 = vst.msk [vmem:[%s214] sm:$0xff] %vm473, %v454
      %490 = vst.msk [vmem:[%s214 + $0x8] sm:$0xff] %vm473, %v488
      %p491 = scmp.lt.s32.totalorder %s15, 3
      %s492 = scalar_select %p491, %s15, 3
      %s493 = smul.addr %s492, 2
      %s494 = smul.addr %s493, 8
      %s495 = scalar_lea.vmem %s4, %s494
      // Predicated region
      $region37: #{ft_bert_forward_steps.1} parent=35 // pred_check
        %p496 = pneg %p127
      $region38: #{ft_bert_forward_steps.1} parent=35 // pred_check_branch
        %498 = sbr.rel (%p496) target = $region40
      $region39: #{ft_bert_forward_steps.1} parent=35 // pred_region
        _
      $region40: #{ft_bert_forward_steps.1} parent=35 // pred_fallthru
        _
    $region36: #{ft_bert_forward_steps.1} parent=5 // pred_fallthru
      _
    %p499 = scmp.le.s32.totalorder 2, %s10
    // Predicated region
    $region41: #{ft_bert_forward_steps.1} parent=5 // pred_check
      %p500 = pneg %p499
    $region42: #{ft_bert_forward_steps.1} parent=5 // pred_check_branch
      %502 = sbr.rel (%p500) target = $region44
    $region43: #{ft_bert_forward_steps.1} parent=5 // pred_region
      %s503 = ssub.s32 %s10, 2
      // Predicated region
      $region45: #{ft_bert_forward_steps.1} parent=43 // pred_check
        %p504 = pneg %p133
      $region46: #{ft_bert_forward_steps.1} parent=43 // pred_check_branch
        %506 = sbr.rel (%p504) target = $region48
      $region47: #{ft_bert_forward_steps.1} parent=43 // pred_region
        %p507 = scmp.lt.s32.totalorder %s16, 3
        %s508 = scalar_select %p507, %s16, 3
        %s509 = smul.addr %s508, 2
        %s510 = smul.addr %s509, 8
        %s511 = scalar_lea.vmem %s4, %s510
      $region48: #{ft_bert_forward_steps.1} parent=43 // pred_fallthru
        _
    $region44: #{ft_bert_forward_steps.1} parent=5 // pred_fallthru
      _
  $region6: #{ft_bert_forward_steps.1} parent=0 // loop_footer
    %s14 = sadd.s32 1, %s10
  $region7: #{ft_bert_forward_steps.1} parent=0 // loop_footer_branch
    %9 = sbr.rel target = $region3
  $region8: #{ft_bert_forward_steps.1} parent=0 // loop_exit
    _

</llo_original>
